<compile_context>
chip_gen: v5e
topology: v5e:2x2
jax: 0.10.0
libtpu: 0.0.40
codegen_flags: <defaults>
</compile_context>

<pallas_src>
import jax
import jax.numpy as jnp
from jax.experimental import pallas as pl
from jax.experimental.pallas import tpu as pltpu


def _round_up(x, m):
    return (x + m - 1) // m * m


# ----------------------------------------------------------------------------
# VMEM budgeting helpers (static Python ints, evaluated at trace time)
# ----------------------------------------------------------------------------
def _vmem_budget_bytes():
    """~75% of per-core VMEM (96 MiB on v5e/v6e, 48 MiB on v7x)."""
    cap = 64 * 1024 * 1024  # conservative fallback, safe on all generations
    try:
        cap = int(pltpu.get_tpu_info().vmem_capacity_bytes)
    except Exception:
        pass
    return (cap * 3) // 4


def _per_step_vmem_bytes(tb, d_in, h, d_out_pad):
    """Rough per-grid-step VMEM estimate for the double-buffered pipeline."""
    w = 2 * (d_in * h + h * h + h * d_out_pad)      # bf16 expert weights
    b = 4 * (2 * h + d_out_pad)                     # f32 biases
    x = 2 * tb * d_in                               # bf16 activations
    g = 4 * tb * 128                                # gate column (lane padded)
    o = 4 * tb * d_out_pad                          # f32 output accumulator
    inter = 2 * 4 * tb * max(h, d_out_pad)          # live f32 intermediates
    return 2 * (w + b + x + g + o) + inter


def _choose_batch_tile(b, d_in, h, d_out_pad, max_tile, vmem_budget):
    """Largest batch tile that fits VMEM; prefer a single tile (weights DMA'd once)."""
    if b <= 128:
        tb = _round_up(b, 8)
        return tb, tb
    cap = max(128, _round_up(max_tile, 128))
    tb = min(cap, _round_up(b, 128))
    while tb > 128 and _per_step_vmem_bytes(tb, d_in, h, d_out_pad) > vmem_budget:
        tb -= 128
    return tb, _round_up(b, tb)


# ----------------------------------------------------------------------------
# Kernel
# ----------------------------------------------------------------------------
def moe_kernel(order_ref, nact_ref,              # scalar-prefetch (SMEM)
               x_ref, gate_ref,
               w1_ref, b12_ref, w2_ref, w3_ref, b3_ref,
               o_ref):
    e = pl.program_id(1)

    @pl.when(e == 0)
    def _init():
        o_ref[...] = jnp.zeros_like(o_ref)

    # Skip experts no token selected (schedule is compacted: the first
    # num_active steps hold the active experts, trailing steps repeat the last
    # active expert so their weight DMAs are deduplicated by the pipeline).
    @pl.when(e < nact_ref[0])
    def _compute():
        x = x_ref[...]                                            # [TB, D_in] bf16
        b12 = b12_ref[...]                                        # [2, H] f32
        h = jnp.dot(x, w1_ref[...], preferred_element_type=jnp.float32)
        h = jnp.maximum(h + b12[0:1, :], 0.0)                     # [TB, H] f32
        h = jnp.dot(h.astype(w2_ref.dtype), w2_ref[...],
                    preferred_element_type=jnp.float32)
        h = jnp.maximum(h + b12[1:2, :], 0.0)                     # [TB, H] f32
        y = jnp.dot(h.astype(w3_ref.dtype), w3_ref[...],
                    preferred_element_type=jnp.float32) + b3_ref[...]
        # gate_ref: [TB, 1] f32 -> weighted accumulation into [TB, D_out_pad]
        o_ref[...] += gate_ref[...] * y


# ----------------------------------------------------------------------------
# One-time parameter preparation (OUTSIDE the jitted forward)
# ----------------------------------------------------------------------------
def prepare_params(params):
    """Cast weights to bf16, lane-pad w3/b3, merge b1/b2. Do this once."""
    w1, b1 = params["w1"], params["b1"]
    w2, b2 = params["w2"], params["b2"]
    w3, b3 = params["w3"], params["b3"]
    E, _, H = w1.shape
    D_out = w3.shape[2]
    D_out_pad = _round_up(D_out, 128)
    return {
        "wg": params["wg"].astype(jnp.float32),
        "bg": params["bg"].astype(jnp.float32),
        "w1": w1.astype(jnp.bfloat16),
        "w2": w2.astype(jnp.bfloat16),
        "w3": jnp.pad(w3, ((0, 0), (0, 0), (0, D_out_pad - D_out))).astype(jnp.bfloat16),
        "b12": jnp.stack([b1, b2], axis=1).astype(jnp.float32),          # [E, 2, H]
        "b3": jnp.pad(b3, ((0, 0), (0, D_out_pad - D_out)))
                 .reshape(E, 1, D_out_pad).astype(jnp.float32),          # [E, 1, Dp]
    }


# ----------------------------------------------------------------------------
# Forward wrapper (jitted)
# ----------------------------------------------------------------------------
def moe_forward(x, params, *, top_k, d_out, max_batch_tile=512):
    B, D_in = x.shape
    wg, bg = params["wg"], params["bg"]
    w1, w2, w3 = params["w1"], params["w2"], params["w3"]
    b12, b3 = params["b12"], params["b3"]
    E = wg.shape[1]
    H = w1.shape[2]
    D_out_pad = w3.shape[2]

    # --- gating (tiny -> plain XLA) -----------------------------------------
    logits = x.astype(jnp.float32) @ wg + bg                      # [B, E]
    top_vals, top_idx = jax.lax.top_k(logits, top_k)              # [B, K]
    top_gates = jax.nn.softmax(top_vals, axis=1)                  # [B, K]
    one_hot = jax.nn.one_hot(top_idx, E, dtype=jnp.float32)       # [B, K, E]
    dense_gates = jnp.sum(one_hot * top_gates[..., None], axis=1)  # [B, E]

    # --- expert-skip schedule (scalar prefetch args) -------------------------
    # At most min(E, B*top_k) experts can ever be active -> static grid cap.
    E_sched = min(E, B * top_k)
    counts = jnp.sum(one_hot, axis=(0, 1))                        # [E]
    active = counts > 0
    num_active = jnp.sum(active.astype(jnp.int32))                # >= 1
    idx = jnp.arange(E, dtype=jnp.int32)
    order_full = jnp.argsort(jnp.where(active, idx, idx + E)).astype(jnp.int32)
    last_active = jnp.take(order_full, num_active - 1)
    sched_idx = jnp.arange(E_sched, dtype=jnp.int32)
    expert_order = jnp.where(sched_idx < num_active,
                             order_full[:E_sched], last_active)   # [E_sched]
    num_active_arr = num_active.reshape(1)                        # [1] int32

    # --- tile sizes / VMEM budget --------------------------------------------
    vmem_budget = _vmem_budget_bytes()
    weights_only = 2 * (2 * (D_in * H + H * H + H * D_out_pad) + 4 * (2 * H + D_out_pad))
    if weights_only > vmem_budget:
        # TODO(synk): K-tile the [H,H] w2 matmul over a third grid axis.
        raise ValueError(
            f"Per-expert weights ({weights_only} B double-buffered) exceed the "
            f"VMEM budget ({vmem_budget} B); K-tiling over H not implemented.")

    TB, B_pad = _choose_batch_tile(B, D_in, H, D_out_pad, max_batch_tile, vmem_budget)
    num_bt = B_pad // TB
    per_step = _per_step_vmem_bytes(TB, D_in, H, D_out_pad)
    vmem_limit = int(max(32 * 1024 * 1024,
                         min(vmem_budget, per_step * 5 // 4 + (2 << 20))))

    # --- activation padding (weights were prepared once, outside this fn) ----
    x_p = jnp.pad(x, ((0, B_pad - B), (0, 0))).astype(jnp.bfloat16)
    gates_p = jnp.pad(dense_gates, ((0, B_pad - B), (0, 0)))      # [B_pad, E]
    gates_eb1 = gates_p.T.reshape(E, B_pad, 1)                    # [E, B_pad, 1]

    grid = (num_bt, E_sched)

    def x_map(bt, e, order_ref, nact_ref):
        return (bt, 0)

    def gate_map(bt, e, order_ref, nact_ref):
        return (order_ref[e], bt, 0)

    def w_map(bt, e, order_ref, nact_ref):
        return (order_ref[e], 0, 0)

    flops = 2 * B_pad * E_sched * (D_in * H + H * H + H * D_out_pad)
    bytes_accessed = (
        num_bt * E_sched * (2 * (D_in * H + H * H + H * D_out_pad)
                            + 4 * (2 * H + D_out_pad))
        + B_pad * (2 * D_in + 4 * E_sched + 8 * D_out_pad))

    out = pl.pallas_call(
        moe_kernel,
        out_shape=jax.ShapeDtypeStruct((B_pad, D_out_pad), jnp.float32),
        grid_spec=pltpu.PrefetchScalarGridSpec(
            num_scalar_prefetch=2,
            grid=grid,
            in_specs=[
                pl.BlockSpec((TB, D_in), x_map),                # x (per batch tile)
                pl.BlockSpec((None, TB, 1), gate_map),          # gate column [TB,1]
                pl.BlockSpec((None, D_in, H), w_map),           # w1[e]
                pl.BlockSpec((None, 2, H), w_map),              # b1/b2 merged [2,H]
                pl.BlockSpec((None, H, H), w_map),              # w2[e]
                pl.BlockSpec((None, H, D_out_pad), w_map),      # w3[e] (lane padded)
                pl.BlockSpec((None, 1, D_out_pad), w_map),      # b3[e]
            ],
            out_specs=pl.BlockSpec((TB, D_out_pad), x_map),     # resident accumulator
        ),
        compiler_params=pltpu.CompilerParams(
            dimension_semantics=("parallel", "arbitrary"),
            vmem_limit_bytes=vmem_limit,
        ),
        cost_estimate=pl.CostEstimate(flops=flops, transcendentals=0,
                                      bytes_accessed=bytes_accessed),
    )(expert_order, num_active_arr,
      x_p, gates_eb1,
      w1, b12, w2, w3, b3)

    return out[:B, :d_out]


moe_forward_jit = jax.jit(moe_forward,
                          static_argnames=("top_k", "d_out", "max_batch_tile"))


# ----------------------------------------------------------------------------
# Deterministic parameter construction (mimics nn.Linear default init)
# ----------------------------------------------------------------------------
def init_params(key, input_dim, output_dim, num_experts, hidden_dim):
    def linear(k, fan_in, fan_out):
        kw, kb = jax.random.split(k)
        bound = 1.0 / jnp.sqrt(fan_in)
        w = jax.random.uniform(kw, (fan_in, fan_out), jnp.float32, -bound, bound)
        b = jax.random.uniform(kb, (fan_out,), jnp.float32, -bound, bound)
        return w, b

    keys = jax.random.split(key, 1 + 3 * num_experts)
    wg, bg = linear(keys[0], input_dim, num_experts)

    w1s, b1s, w2s, b2s, w3s, b3s = [], [], [], [], [], []
    for e in range(num_experts):
        k1, k2, k3 = keys[1 + 3 * e], keys[2 + 3 * e], keys[3 + 3 * e]
        w1, b1 = linear(k1, input_dim, hidden_dim)
        w2, b2 = linear(k2, hidden_dim, hidden_dim)
        w3, b3 = linear(k3, hidden_dim, output_dim)
        w1s.append(w1); b1s.append(b1)
        w2s.append(w2); b2s.append(b2)
        w3s.append(w3); b3s.append(b3)

    return {
        "wg": wg, "bg": bg,
        "w1": jnp.stack(w1s), "b1": jnp.stack(b1s),
        "w2": jnp.stack(w2s), "b2": jnp.stack(b2s),
        "w3": jnp.stack(w3s), "b3": jnp.stack(b3s),
    }


# ----------------------------------------------------------------------------
# Pure-JAX f32 reference (same math as the PyTorch forward)
# ----------------------------------------------------------------------------
def ref_forward(x, params, top_k):
    E = params["wg"].shape[1]
    logits = x @ params["wg"] + params["bg"]
    top_vals, top_idx = jax.lax.top_k(logits, top_k)
    gates = jax.nn.softmax(top_vals, axis=1)

    def expert(i, xi):
        h = jnp.maximum(xi @ params["w1"][i] + params["b1"][i], 0.0)
        h = jnp.maximum(h @ params["w2"][i] + params["b2"][i], 0.0)
        return h @ params["w3"][i] + params["b3"][i]

    all_out = jnp.stack([expert(i, x) for i in range(E)])        # [E, B, D_out]
    dense = jnp.sum(
        jax.nn.one_hot(top_idx, E, dtype=jnp.float32) * gates[..., None], axis=1
    )                                                            # [B, E]
    return jnp.einsum("be,ebd->bd", dense, all_out)


# ----------------------------------------------------------------------------
if __name__ == "__main__":
    # small shapes consistent with MoE(input_dim, output_dim, num_experts, ...)
    batch = 8
    input_dim = 32
    output_dim = 16
    num_experts = 4
    hidden_dim = 128          # module default expert_hidden_dim
    top_k = 2

    key = jax.random.PRNGKey(0)
    kx, kp = jax.random.split(key)
    x = jax.random.normal(kx, (batch, input_dim), jnp.float32)
    params = init_params(kp, input_dim, output_dim, num_experts, hidden_dim)

    # One-time weight cast / pad / bias merge, outside the jitted forward.
    prepared = prepare_params(params)

    out = moe_forward_jit(x, prepared, top_k=top_k, d_out=output_dim)
    out = jax.block_until_ready(out)

    ref = ref_forward(x, params, top_k)
    assert out.shape == (batch, output_dim)
    # bf16 weights/activations in the kernel vs f32 reference -> loosened tol.
    assert jnp.allclose(out, ref, atol=3e-2, rtol=3e-2), "mismatch vs reference"

    print("KERNEL_OK")
</pallas_src>

<mosaic_0001>
module attributes {stable_mosaic.version = 11 : i64} {
  func.func @moe_kernel(%arg0: i32, %arg1: i32, %arg2: memref<4xi32, #tpu.memory_space<smem>>, %arg3: memref<1xi32, #tpu.memory_space<smem>>, %arg4: memref<8x32xbf16, #tpu.memory_space<vmem>>, %arg5: memref<1x8x1xf32, #tpu.memory_space<vmem>>, %arg6: memref<1x32x128xbf16, #tpu.memory_space<vmem>>, %arg7: memref<1x2x128xf32, #tpu.memory_space<vmem>>, %arg8: memref<1x128x128xbf16, #tpu.memory_space<vmem>>, %arg9: memref<1x128x128xbf16, #tpu.memory_space<vmem>>, %arg10: memref<1x1x128xf32, #tpu.memory_space<vmem>>, %arg11: memref<8x128xf32, #tpu.memory_space<vmem>>) attributes {dimension_semantics = [#tpu.dimension_semantics<parallel>, #tpu.dimension_semantics<arbitrary>], iteration_bounds = array<i64: 1, 4>, scalar_prefetch = 2 : i64, scratch_operands = 0 : i64, tpu.core_type = #tpu.core_type<tc>, window_params = [{transform_indices = @transform_0, window_bounds = array<i64: 8, 32>}, {transform_indices = @transform_1, window_bounds = array<i64: 1, 8, 1>}, {transform_indices = @transform_2, window_bounds = array<i64: 1, 32, 128>}, {transform_indices = @transform_3, window_bounds = array<i64: 1, 2, 128>}, {transform_indices = @transform_4, window_bounds = array<i64: 1, 128, 128>}, {transform_indices = @transform_5, window_bounds = array<i64: 1, 128, 128>}, {transform_indices = @transform_6, window_bounds = array<i64: 1, 1, 128>}, {transform_indices = @transform_7, window_bounds = array<i64: 8, 128>}]} {
    %c0_i32 = arith.constant 0 : i32
    %0 = arith.cmpi eq, %arg1, %c0_i32 : i32
    %1 = arith.extui %0 : i1 to i32
    %c0_i32_0 = arith.constant 0 : i32
    %2 = arith.cmpi ne, %1, %c0_i32_0 : i32
    scf.if %2 {
      %cst = arith.constant 0.000000e+00 : f32
      %7 = vector.broadcast %cst : f32 to vector<8x128xf32>
      %c0_2 = arith.constant 0 : index
      %c0_3 = arith.constant 0 : index
      %8 = vector.load %arg11[%c0_2, %c0_3] : memref<8x128xf32, #tpu.memory_space<vmem>>, vector<8x128xf32>
      tpu.vector_store %arg11[%c0_2, %c0_3], %7 {strides = array<i32>} : memref<8x128xf32, #tpu.memory_space<vmem>>, vector<8x128xf32>,
    } else {
    }
    %c0 = arith.constant 0 : index
    %3 = memref.load %arg3[%c0] : memref<1xi32, #tpu.memory_space<smem>>
    %4 = arith.cmpi slt, %arg1, %3 : i32
    %5 = arith.extui %4 : i1 to i32
    %c0_i32_1 = arith.constant 0 : i32
    %6 = arith.cmpi ne, %5, %c0_i32_1 : i32
    scf.if %6 {
      %c0_2 = arith.constant 0 : index
      %c0_3 = arith.constant 0 : index
      %7 = vector.load %arg4[%c0_2, %c0_3] : memref<8x32xbf16, #tpu.memory_space<vmem>>, vector<8x32xbf16>
      %c0_4 = arith.constant 0 : index
      %c0_5 = arith.constant 0 : index
      %c0_6 = arith.constant 0 : index
      %8 = vector.load %arg7[%c0_4, %c0_5, %c0_6] : memref<1x2x128xf32, #tpu.memory_space<vmem>>, vector<1x2x128xf32>
      %9 = vector.shape_cast %8 : vector<1x2x128xf32> to vector<2x128xf32>
      %c0_7 = arith.constant 0 : index
      %c0_8 = arith.constant 0 : index
      %c0_9 = arith.constant 0 : index
      %10 = vector.load %arg6[%c0_7, %c0_8, %c0_9] : memref<1x32x128xbf16, #tpu.memory_space<vmem>>, vector<1x32x128xbf16>
      %11 = vector.shape_cast %10 : vector<1x32x128xbf16> to vector<32x128xbf16>
      %cst = arith.constant dense<0.000000e+00> : vector<8x128xf32>
      %12 = tpu.matmul %7, %11, %cst {dimension_numbers = #tpu.dot_dimension_numbers<[1], [0], [0], [1], [0, 0, 1, 1], [], []>} : vector<8x32xbf16>, vector<32x128xbf16>, vector<8x128xf32> -> vector<8x128xf32>
      %13 = vector.extract_strided_slice %9 {offsets = [0, 0], sizes = [1, 128], strides = [1, 1]} : vector<2x128xf32> to vector<1x128xf32>
      %14 = vector.broadcast %13 : vector<1x128xf32> to vector<8x128xf32>
      %15 = arith.addf %12, %14 : vector<8x128xf32>
      %cst_10 = arith.constant 0.000000e+00 : f32
      %16 = vector.broadcast %cst_10 : f32 to vector<8x128xf32>
      %17 = arith.maximumf %15, %16 : vector<8x128xf32>
      %18 = arith.truncf %17 : vector<8x128xf32> to vector<8x128xbf16>
      %c0_11 = arith.constant 0 : index
      %c0_12 = arith.constant 0 : index
      %c0_13 = arith.constant 0 : index
      %19 = vector.load %arg8[%c0_11, %c0_12, %c0_13] : memref<1x128x128xbf16, #tpu.memory_space<vmem>>, vector<1x128x128xbf16>
      %20 = vector.shape_cast %19 : vector<1x128x128xbf16> to vector<128x128xbf16>
      %cst_14 = arith.constant dense<0.000000e+00> : vector<8x128xf32>
      %21 = tpu.matmul %18, %20, %cst_14 {dimension_numbers = #tpu.dot_dimension_numbers<[1], [0], [0], [1], [0, 0, 1, 1], [], []>} : vector<8x128xbf16>, vector<128x128xbf16>, vector<8x128xf32> -> vector<8x128xf32>
      %22 = vector.extract_strided_slice %9 {offsets = [1, 0], sizes = [1, 128], strides = [1, 1]} : vector<2x128xf32> to vector<1x128xf32>
      %23 = vector.broadcast %22 : vector<1x128xf32> to vector<8x128xf32>
      %24 = arith.addf %21, %23 : vector<8x128xf32>
      %cst_15 = arith.constant 0.000000e+00 : f32
      %25 = vector.broadcast %cst_15 : f32 to vector<8x128xf32>
      %26 = arith.maximumf %24, %25 : vector<8x128xf32>
      %27 = arith.truncf %26 : vector<8x128xf32> to vector<8x128xbf16>
      %c0_16 = arith.constant 0 : index
      %c0_17 = arith.constant 0 : index
      %c0_18 = arith.constant 0 : index
      %28 = vector.load %arg9[%c0_16, %c0_17, %c0_18] : memref<1x128x128xbf16, #tpu.memory_space<vmem>>, vector<1x128x128xbf16>
      %29 = vector.shape_cast %28 : vector<1x128x128xbf16> to vector<128x128xbf16>
      %cst_19 = arith.constant dense<0.000000e+00> : vector<8x128xf32>
      %30 = tpu.matmul %27, %29, %cst_19 {dimension_numbers = #tpu.dot_dimension_numbers<[1], [0], [0], [1], [0, 0, 1, 1], [], []>} : vector<8x128xbf16>, vector<128x128xbf16>, vector<8x128xf32> -> vector<8x128xf32>
      %c0_20 = arith.constant 0 : index
      %c0_21 = arith.constant 0 : index
      %c0_22 = arith.constant 0 : index
      %31 = vector.load %arg10[%c0_20, %c0_21, %c0_22] : memref<1x1x128xf32, #tpu.memory_space<vmem>>, vector<1x1x128xf32>
      %32 = vector.shape_cast %31 : vector<1x1x128xf32> to vector<1x128xf32>
      %33 = vector.broadcast %32 : vector<1x128xf32> to vector<8x128xf32>
      %34 = arith.addf %30, %33 : vector<8x128xf32>
      %c0_23 = arith.constant 0 : index
      %c0_24 = arith.constant 0 : index
      %35 = vector.load %arg11[%c0_23, %c0_24] : memref<8x128xf32, #tpu.memory_space<vmem>>, vector<8x128xf32>
      %c0_25 = arith.constant 0 : index
      %c0_26 = arith.constant 0 : index
      %c0_27 = arith.constant 0 : index
      %36 = vector.load %arg5[%c0_25, %c0_26, %c0_27] : memref<1x8x1xf32, #tpu.memory_space<vmem>>, vector<1x8x1xf32>
      %37 = vector.shape_cast %36 : vector<1x8x1xf32> to vector<8x1xf32>
      %38 = vector.broadcast %37 : vector<8x1xf32> to vector<8x128xf32>
      %39 = arith.mulf %38, %34 : vector<8x128xf32>
      %40 = arith.addf %35, %39 : vector<8x128xf32>
      %c0_28 = arith.constant 0 : index
      %c0_29 = arith.constant 0 : index
      %41 = vector.load %arg11[%c0_28, %c0_29] : memref<8x128xf32, #tpu.memory_space<vmem>>, vector<8x128xf32>
      tpu.vector_store %arg11[%c0_28, %c0_29], %40 {strides = array<i32>} : memref<8x128xf32, #tpu.memory_space<vmem>>, vector<8x128xf32>,
    } else {
    }
    return
  }
  func.func @transform_0(%arg0: i32, %arg1: i32, %arg2: memref<4xi32, #tpu.memory_space<smem>>, %arg3: memref<1xi32, #tpu.memory_space<smem>>) -> (i32, i32) {
    %c0_i32 = arith.constant 0 : i32
    %c0_i32_0 = arith.constant 0 : i32
    return %arg0, %c0_i32 : i32, i32
  }
  func.func @transform_1(%arg0: i32, %arg1: i32, %arg2: memref<4xi32, #tpu.memory_space<smem>>, %arg3: memref<1xi32, #tpu.memory_space<smem>>) -> (i32, i32, i32) {
    %0 = arith.index_cast %arg1 : i32 to index
    %1 = memref.load %arg2[%0] : memref<4xi32, #tpu.memory_space<smem>>
    %c0_i32 = arith.constant 0 : i32
    %c0_i32_0 = arith.constant 0 : i32
    return %1, %arg0, %c0_i32 : i32, i32, i32
  }
  func.func @transform_2(%arg0: i32, %arg1: i32, %arg2: memref<4xi32, #tpu.memory_space<smem>>, %arg3: memref<1xi32, #tpu.memory_space<smem>>) -> (i32, i32, i32) {
    %0 = arith.index_cast %arg1 : i32 to index
    %1 = memref.load %arg2[%0] : memref<4xi32, #tpu.memory_space<smem>>
    %c0_i32 = arith.constant 0 : i32
    %c0_i32_0 = arith.constant 0 : i32
    %c0_i32_1 = arith.constant 0 : i32
    return %1, %c0_i32, %c0_i32_0 : i32, i32, i32
  }
  func.func @transform_3(%arg0: i32, %arg1: i32, %arg2: memref<4xi32, #tpu.memory_space<smem>>, %arg3: memref<1xi32, #tpu.memory_space<smem>>) -> (i32, i32, i32) {
    %0 = arith.index_cast %arg1 : i32 to index
    %1 = memref.load %arg2[%0] : memref<4xi32, #tpu.memory_space<smem>>
    %c0_i32 = arith.constant 0 : i32
    %c0_i32_0 = arith.constant 0 : i32
    %c0_i32_1 = arith.constant 0 : i32
    return %1, %c0_i32, %c0_i32_0 : i32, i32, i32
  }
  func.func @transform_4(%arg0: i32, %arg1: i32, %arg2: memref<4xi32, #tpu.memory_space<smem>>, %arg3: memref<1xi32, #tpu.memory_space<smem>>) -> (i32, i32, i32) {
    %0 = arith.index_cast %arg1 : i32 to index
    %1 = memref.load %arg2[%0] : memref<4xi32, #tpu.memory_space<smem>>
    %c0_i32 = arith.constant 0 : i32
    %c0_i32_0 = arith.constant 0 : i32
    %c0_i32_1 = arith.constant 0 : i32
    return %1, %c0_i32, %c0_i32_0 : i32, i32, i32
  }
  func.func @transform_5(%arg0: i32, %arg1: i32, %arg2: memref<4xi32, #tpu.memory_space<smem>>, %arg3: memref<1xi32, #tpu.memory_space<smem>>) -> (i32, i32, i32) {
    %0 = arith.index_cast %arg1 : i32 to index
    %1 = memref.load %arg2[%0] : memref<4xi32, #tpu.memory_space<smem>>
    %c0_i32 = arith.constant 0 : i32
    %c0_i32_0 = arith.constant 0 : i32
    %c0_i32_1 = arith.constant 0 : i32
    return %1, %c0_i32, %c0_i32_0 : i32, i32, i32
  }
  func.func @transform_6(%arg0: i32, %arg1: i32, %arg2: memref<4xi32, #tpu.memory_space<smem>>, %arg3: memref<1xi32, #tpu.memory_space<smem>>) -> (i32, i32, i32) {
    %0 = arith.index_cast %arg1 : i32 to index
    %1 = memref.load %arg2[%0] : memref<4xi32, #tpu.memory_space<smem>>
    %c0_i32 = arith.constant 0 : i32
    %c0_i32_0 = arith.constant 0 : i32
    %c0_i32_1 = arith.constant 0 : i32
    return %1, %c0_i32, %c0_i32_0 : i32, i32, i32
  }
  func.func @transform_7(%arg0: i32, %arg1: i32, %arg2: memref<4xi32, #tpu.memory_space<smem>>, %arg3: memref<1xi32, #tpu.memory_space<smem>>) -> (i32, i32) {
    %c0_i32 = arith.constant 0 : i32
    %c0_i32_0 = arith.constant 0 : i32
    return %arg0, %c0_i32 : i32, i32
  }
}

</mosaic_0001>

<llo_original>
// kernel: moe_forward.1
$region0: #{moe_forward.1}
  #allocation0 [shape = 'u32[]', space=smem, size = 0x4, offset = 0x4, fixed_abs, tag = 'smem constant byte address 0x4 - core index']
  #allocation1 [shape = 'u32[72,128]{1,0:T(1,128)}', space=vmem, size = 0x9000, scoped, tag = 'internal scratch']
  #allocation2 [shape = 's32[1]{0}', space=sflag, size = 0x4, scoped, tag = 'scoped memory for moe_forward.1']
  #allocation3 [shape = 'u8[512]{0}', space=smem, size = 0x200, scoped, tag = 'prefetched SMEM operand 0']
  #allocation4 [shape = 's32[1]{0:T(128)S(6)}', space=smem, size = 0x200, scoped, tag = 'prefetched SMEM operand 1']
  %s0 = inlined_call_operand.vmem [shape: s32[4], index: 0, kind: input, shape index: {}]
  %s1 = inlined_call_operand.<no memory space> [shape: s32[1], index: 1, kind: input, shape index: {}]
  %s2 = inlined_call_operand.vmem [shape: bf16[8,32], index: 2, kind: input, shape index: {}]
  %s3 = inlined_call_operand.vmem [shape: f32[4,8,1], index: 3, kind: input, shape index: {}]
  %s4 = inlined_call_operand.vmem [shape: bf16[4,32,128], index: 4, kind: input, shape index: {}]
  %s5 = inlined_call_operand.vmem [shape: f32[4,2,128], index: 5, kind: input, shape index: {}]
  %s6 = inlined_call_operand.hbm [shape: bf16[4,128,128], index: 6, kind: input, shape index: {}]
  %s7 = inlined_call_operand.hbm [shape: bf16[4,128,128], index: 7, kind: input, shape index: {}]
  %s8 = inlined_call_operand.vmem [shape: f32[4,1,128], index: 8, kind: input, shape index: {}]
  %s9 = inlined_call_operand.hbm [shape: f32[8,128], index: 9, kind: output, shape index: {}]
  %s10 = sld [smem:[#allocation0]]
  $region77: #{moe_forward.1} parent=0
    _
  %s12 = ssub.s32 1, %s10
  %s13 = scalar_select 0, %s12, %s10
  %s15 = sshll.u32 %s0, 4
  %s16 = int_to_ptr.vmem [resolvable:$true] %s15
  %18 = dma.vmem_to_smem %s16, 16, [#allocation3], [#allocation2]
  %19 = sst [smem:[#allocation4]] %s1
  %21 = dma.done [#allocation2], 16
  %22 = sfence
  $region1: #{moe_forward.1} parent=0
    #allocation5 [shape = 'u8[65536]{0}', space=vmem, size = 0x10000, scoped, tag = 'input window, operand 6']
    #allocation6 [shape = 's32[2]{0}', space=sflag, size = 0x8, scoped, tag = 'scoped memory for moe_forward.1']
    #allocation7 [shape = 's32[2]{0}', space=sflag, size = 0x8, scoped, tag = 'scoped memory for moe_forward.1']
    #allocation8 [shape = 'u8[65536]{0}', space=vmem, size = 0x10000, scoped, tag = 'input window, operand 7']
    #allocation9 [shape = 's32[2]{0}', space=sflag, size = 0x8, scoped, tag = 'scoped memory for moe_forward.1']
    #allocation10 [shape = 'u8[4096]{0}', space=vmem, size = 0x1000, scoped, tag = 'output window, operand 0, single buffered']
    %23 = vsyncpa [#allocation6], 0
    %s24 = scalar_lea.sflag [#allocation6], 1
    %25 = vsyncpa %s24, 0
    %26 = vsyncpa [#allocation9], 0
    %s27 = scalar_lea.sflag [#allocation9], 1
    %28 = vsyncpa %s27, 0
    %29 = vsyncpa [#allocation7], 0
    loop: start=0, step=1, limit=6
    $region2: #{moe_forward.1} parent=1 // loop_pre_header
      _
    $region3: #{moe_forward.1} parent=1 // loop_header
      %s31 = sphi 0, %s35
      %p32 = scmp.ge.s32.totalorder %s31, 6
      %s38 = sphi 0, %s50
      %s39 = sphi 0, %s46
      %s40 = sphi 0, %s38
      %s41 = sphi 0, %s39
      %s42 = sphi 0, %s40
      %s43 = sphi 0, %s41
      %s53 = sphi 0, %s55
      %s56 = sphi 0, %s53
      %s57 = sphi 0, %s56
      %s73 = sphi 0, %s57
      %s83 = sphi 0, %s85
      %s86 = sphi 0, %s83
      %s87 = sphi 0, %s86
      %s103 = sphi 0, %s87
      %s111 = sphi 0, %s113
      %s114 = sphi 0, %s111
      %s115 = sphi 0, %s114
      %s131 = sphi 0, %s115
      %s139 = sphi 0, %s141
      %s142 = sphi 0, %s139
      %s143 = sphi 0, %s142
      %s159 = sphi 0, %s143
      %s167 = sphi 0, %s169
      %s170 = sphi 0, %s167
      %s171 = sphi 0, %s170
      %s187 = sphi 0, %s171
      %s195 = sphi 0, %s197
      %s198 = sphi 0, %s195
      %s199 = sphi 0, %s198
      %s215 = sphi 0, %s199
      %s223 = sphi 0, %s225
      %s226 = sphi 0, %s223
      %s227 = sphi 0, %s226
      %s243 = sphi 0, %s227
      %s249 = sphi 0, %s251
      %s252 = sphi 0, %s249
      %s253 = sphi 0, %s252
      %s269 = sphi 0, %s253
    $region4: #{moe_forward.1} parent=1 // loop_header_branch
      %34 = sbr.rel (%p32) target = $region8
    $region5: #{moe_forward.1} parent=1 // loop_body
      %s36 = ssub.s32 %s31, 1
      %s37 = ssub.s32 %s31, 2
      %s44 = sadd.s32 1, %s39
      %p45 = scmp.ge.s32.totalorder %s44, 4
      %s46 = scalar_select %p45, 0, %s44
      %s47 = sadd.s32 1, %s38
      %s48 = scalar_select %p45, %s47, %s38
      %p49 = scmp.ge.s32.totalorder %s48, 1
      %s50 = scalar_select %p49, 0, %s48
      %s51 = ssub.s32 %s38, %s50
      %p52 = scmp.eq.s32.totalorder %s51, 0
      %s54 = sadd.s32 %s53, 1
      %s55 = scalar_select %p52, %s53, %s54
      %p58 = pneg %p52
      %p59 = scmp.eq.s32.totalorder %s31, 3
      %p60 = por %p58, %p59
      %p61 = scmp.ne.s32.totalorder %s53, %s56
      %p62 = scmp.eq.s32.totalorder %s31, 0
      %p63 = por %p61, %p62
      %p64 = scmp.ne.s32.totalorder %s53, %s56
      %p65 = scmp.eq.s32.totalorder %s36, 3
      %p66 = por %p64, %p65
      %p67 = scmp.ne.s32.totalorder %s56, %s57
      %p68 = scmp.eq.s32.totalorder %s36, 0
      %p69 = por %p67, %p68
      %p70 = scmp.ne.s32.totalorder %s56, %s57
      %p71 = scmp.eq.s32.totalorder %s37, 3
      %p72 = por %p70, %p71
      %p74 = scmp.ne.s32.totalorder %s57, %s73
      %p75 = scmp.eq.s32.totalorder %s37, 0
      %p76 = por %p74, %p75
      %s77 = sld [smem:[#allocation3 + %s39]]
      %s78 = sld [smem:[#allocation3 + %s46]]
      %s79 = ssub.s32 %s77, %s78
      %s80 = ssub.s32 %s38, %s50
      %s81 = sor.u32 %s79, %s80
      %p82 = scmp.eq.s32.totalorder %s81, 0
      %s84 = sadd.s32 %s83, 1
      %s85 = scalar_select %p82, %s83, %s84
      %p88 = pneg %p82
      %p89 = scmp.eq.s32.totalorder %s31, 3
      %p90 = por %p88, %p89
      %p91 = scmp.ne.s32.totalorder %s83, %s86
      %p92 = scmp.eq.s32.totalorder %s31, 0
      %p93 = por %p91, %p92
      %p94 = scmp.ne.s32.totalorder %s83, %s86
      %p95 = scmp.eq.s32.totalorder %s36, 3
      %p96 = por %p94, %p95
      %p97 = scmp.ne.s32.totalorder %s86, %s87
      %p98 = scmp.eq.s32.totalorder %s36, 0
      %p99 = por %p97, %p98
      %p100 = scmp.ne.s32.totalorder %s86, %s87
      %p101 = scmp.eq.s32.totalorder %s37, 3
      %p102 = por %p100, %p101
      %p104 = scmp.ne.s32.totalorder %s87, %s103
      %p105 = scmp.eq.s32.totalorder %s37, 0
      %p106 = por %p104, %p105
      %s107 = sld [smem:[#allocation3 + %s39]]
      %s108 = sld [smem:[#allocation3 + %s46]]
      %s109 = ssub.s32 %s107, %s108
      %p110 = scmp.eq.s32.totalorder %s109, 0
      %s112 = sadd.s32 %s111, 1
      %s113 = scalar_select %p110, %s111, %s112
      %p116 = pneg %p110
      %p117 = scmp.eq.s32.totalorder %s31, 3
      %p118 = por %p116, %p117
      %p119 = scmp.ne.s32.totalorder %s111, %s114
      %p120 = scmp.eq.s32.totalorder %s31, 0
      %p121 = por %p119, %p120
      %p122 = scmp.ne.s32.totalorder %s111, %s114
      %p123 = scmp.eq.s32.totalorder %s36, 3
      %p124 = por %p122, %p123
      %p125 = scmp.ne.s32.totalorder %s114, %s115
      %p126 = scmp.eq.s32.totalorder %s36, 0
      %p127 = por %p125, %p126
      %p128 = scmp.ne.s32.totalorder %s114, %s115
      %p129 = scmp.eq.s32.totalorder %s37, 3
      %p130 = por %p128, %p129
      %p132 = scmp.ne.s32.totalorder %s115, %s131
      %p133 = scmp.eq.s32.totalorder %s37, 0
      %p134 = por %p132, %p133
      %s135 = sld [smem:[#allocation3 + %s39]]
      %s136 = sld [smem:[#allocation3 + %s46]]
      %s137 = ssub.s32 %s135, %s136
      %p138 = scmp.eq.s32.totalorder %s137, 0
      %s140 = sadd.s32 %s139, 1
      %s141 = scalar_select %p138, %s139, %s140
      %p144 = pneg %p138
      %p145 = scmp.eq.s32.totalorder %s31, 3
      %p146 = por %p144, %p145
      %p147 = scmp.ne.s32.totalorder %s139, %s142
      %p148 = scmp.eq.s32.totalorder %s31, 0
      %p149 = por %p147, %p148
      %p150 = scmp.ne.s32.totalorder %s139, %s142
      %p151 = scmp.eq.s32.totalorder %s36, 3
      %p152 = por %p150, %p151
      %p153 = scmp.ne.s32.totalorder %s142, %s143
      %p154 = scmp.eq.s32.totalorder %s36, 0
      %p155 = por %p153, %p154
      %p156 = scmp.ne.s32.totalorder %s142, %s143
      %p157 = scmp.eq.s32.totalorder %s37, 3
      %p158 = por %p156, %p157
      %p160 = scmp.ne.s32.totalorder %s143, %s159
      %p161 = scmp.eq.s32.totalorder %s37, 0
      %p162 = por %p160, %p161
      %s163 = sld [smem:[#allocation3 + %s39]]
      %s164 = sld [smem:[#allocation3 + %s46]]
      %s165 = ssub.s32 %s163, %s164
      %p166 = scmp.eq.s32.totalorder %s165, 0
      %s168 = sadd.s32 %s167, 1
      %s169 = scalar_select %p166, %s167, %s168
      %p172 = pneg %p166
      %p173 = scmp.eq.s32.totalorder %s31, 3
      %p174 = por %p172, %p173
      %p175 = scmp.ne.s32.totalorder %s167, %s170
      %p176 = scmp.eq.s32.totalorder %s31, 0
      %p177 = por %p175, %p176
      %p178 = scmp.ne.s32.totalorder %s167, %s170
      %p179 = scmp.eq.s32.totalorder %s36, 3
      %p180 = por %p178, %p179
      %p181 = scmp.ne.s32.totalorder %s170, %s171
      %p182 = scmp.eq.s32.totalorder %s36, 0
      %p183 = por %p181, %p182
      %p184 = scmp.ne.s32.totalorder %s170, %s171
      %p185 = scmp.eq.s32.totalorder %s37, 3
      %p186 = por %p184, %p185
      %p188 = scmp.ne.s32.totalorder %s171, %s187
      %p189 = scmp.eq.s32.totalorder %s37, 0
      %p190 = por %p188, %p189
      %s191 = sld [smem:[#allocation3 + %s39]]
      %s192 = sld [smem:[#allocation3 + %s46]]
      %s193 = ssub.s32 %s191, %s192
      %p194 = scmp.eq.s32.totalorder %s193, 0
      %s196 = sadd.s32 %s195, 1
      %s197 = scalar_select %p194, %s195, %s196
      %p200 = pneg %p194
      %p201 = scmp.eq.s32.totalorder %s31, 3
      %p202 = por %p200, %p201
      %p203 = scmp.ne.s32.totalorder %s195, %s198
      %p204 = scmp.eq.s32.totalorder %s31, 0
      %p205 = por %p203, %p204
      %p206 = scmp.ne.s32.totalorder %s195, %s198
      %p207 = scmp.eq.s32.totalorder %s36, 3
      %p208 = por %p206, %p207
      %p209 = scmp.ne.s32.totalorder %s198, %s199
      %p210 = scmp.eq.s32.totalorder %s36, 0
      %p211 = por %p209, %p210
      %p212 = scmp.ne.s32.totalorder %s198, %s199
      %p213 = scmp.eq.s32.totalorder %s37, 3
      %p214 = por %p212, %p213
      %p216 = scmp.ne.s32.totalorder %s199, %s215
      %p217 = scmp.eq.s32.totalorder %s37, 0
      %p218 = por %p216, %p217
      %s219 = sld [smem:[#allocation3 + %s39]]
      %s220 = sld [smem:[#allocation3 + %s46]]
      %s221 = ssub.s32 %s219, %s220
      %p222 = scmp.eq.s32.totalorder %s221, 0
      %s224 = sadd.s32 %s223, 1
      %s225 = scalar_select %p222, %s223, %s224
      %p228 = pneg %p222
      %p229 = scmp.eq.s32.totalorder %s31, 3
      %p230 = por %p228, %p229
      %p231 = scmp.ne.s32.totalorder %s223, %s226
      %p232 = scmp.eq.s32.totalorder %s31, 0
      %p233 = por %p231, %p232
      %p234 = scmp.ne.s32.totalorder %s223, %s226
      %p235 = scmp.eq.s32.totalorder %s36, 3
      %p236 = por %p234, %p235
      %p237 = scmp.ne.s32.totalorder %s226, %s227
      %p238 = scmp.eq.s32.totalorder %s36, 0
      %p239 = por %p237, %p238
      %p240 = scmp.ne.s32.totalorder %s226, %s227
      %p241 = scmp.eq.s32.totalorder %s37, 3
      %p242 = por %p240, %p241
      %p244 = scmp.ne.s32.totalorder %s227, %s243
      %p245 = scmp.eq.s32.totalorder %s37, 0
      %p246 = por %p244, %p245
      %s247 = ssub.s32 %s38, %s50
      %p248 = scmp.eq.s32.totalorder %s247, 0
      %s250 = sadd.s32 %s249, 1
      %s251 = scalar_select %p248, %s249, %s250
      %p254 = pneg %p248
      %p255 = scmp.eq.s32.totalorder %s31, 3
      %p256 = por %p254, %p255
      %p257 = scmp.ne.s32.totalorder %s249, %s252
      %p258 = scmp.eq.s32.totalorder %s31, 0
      %p259 = por %p257, %p258
      %p260 = scmp.ne.s32.totalorder %s249, %s252
      %p261 = scmp.eq.s32.totalorder %s36, 3
      %p262 = por %p260, %p261
      %p263 = scmp.ne.s32.totalorder %s252, %s253
      %p264 = scmp.eq.s32.totalorder %s36, 0
      %p265 = por %p263, %p264
      %p266 = scmp.ne.s32.totalorder %s252, %s253
      %p267 = scmp.eq.s32.totalorder %s37, 3
      %p268 = por %p266, %p267
      %p270 = scmp.ne.s32.totalorder %s253, %s269
      %p271 = scmp.eq.s32.totalorder %s37, 0
      %p272 = por %p270, %p271
      %p273 = scmp.le.s32.totalorder 1, %s31
      %p274 = scmp.lt.s32.totalorder %s31, 5
      %p275 = pnand %p273, %p274
      %p276 = pneg %p275
      // Predicated region
      $region9: #{moe_forward.1} parent=5 // pred_check
        _
      $region10: #{moe_forward.1} parent=5 // pred_check_branch
        %278 = sbr.rel (%p275) target = $region12
      $region11: #{moe_forward.1} parent=5 // pred_region
        %s279 = ssub.s32 %s31, 1
        // Predicated region
        $region13: #{moe_forward.1} parent=11 // pred_check
          %p280 = pneg %p69
        $region14: #{moe_forward.1} parent=11 // pred_check_branch
          %282 = sbr.rel (%p280) target = $region16
        $region15: #{moe_forward.1} parent=11 // pred_region
          %p283 = scmp.lt.s32.totalorder %s40, 0
          %s284 = scalar_select %p283, %s40, 0
          %s285 = smul.addr %s284, 4
          %s286 = scalar_lea.vmem %s2, %s285
        $region16: #{moe_forward.1} parent=11 // pred_fallthru
          _
      $region12: #{moe_forward.1} parent=5 // pred_fallthru
        _
      %p287 = scmp.lt.s32.totalorder %s31, 4
      // Predicated region
      $region17: #{moe_forward.1} parent=5 // pred_check
        %p288 = pneg %p287
      $region18: #{moe_forward.1} parent=5 // pred_check_branch
        %290 = sbr.rel (%p288) target = $region20
      $region19: #{moe_forward.1} parent=5 // pred_region
        // Predicated region
        $region21: #{moe_forward.1} parent=19 // pred_check
          %p291 = pneg %p93
        $region22: #{moe_forward.1} parent=19 // pred_check_branch
          %293 = sbr.rel (%p291) target = $region24
        $region23: #{moe_forward.1} parent=19 // pred_region
          %s294 = sld [smem:[#allocation3 + %s39]]
          %p295 = scmp.lt.s32.totalorder %s294, 3
          %s296 = scalar_select %p295, %s294, 3
          %p297 = scmp.lt.s32.totalorder %s38, 0
          %s298 = scalar_select %p297, %s38, 0
          %s299 = sadd.s32 %s298, %s296
          %s300 = smul.addr %s299, 8
          %s301 = scalar_lea.vmem %s3, %s300
          %s302 = sld [smem:[#allocation3 + %s39]]
        $region24: #{moe_forward.1} parent=19 // pred_fallthru
          _
        // Predicated region
        $region25: #{moe_forward.1} parent=19 // pred_check
          %p303 = pneg %p121
        $region26: #{moe_forward.1} parent=19 // pred_check_branch
          %305 = sbr.rel (%p303) target = $region28
        $region27: #{moe_forward.1} parent=19 // pred_region
          %s306 = sld [smem:[#allocation3 + %s39]]
          %p307 = scmp.lt.s32.totalorder %s306, 3
          %s308 = scalar_select %p307, %s306, 3
          %s309 = smul.addr %s308, 4
          %s310 = smul.addr %s309, 4
          %s311 = scalar_lea.vmem %s4, %s310
          %s312 = sld [smem:[#allocation3 + %s39]]
        $region28: #{moe_forward.1} parent=19 // pred_fallthru
          _
        // Predicated region
        $region29: #{moe_forward.1} parent=19 // pred_check
          %p313 = pneg %p149
        $region30: #{moe_forward.1} parent=19 // pred_check_branch
          %315 = sbr.rel (%p313) target = $region32
        $region31: #{moe_forward.1} parent=19 // pred_region
          %s316 = sld [smem:[#allocation3 + %s39]]
          %p317 = scmp.lt.s32.totalorder %s316, 3
          %s318 = scalar_select %p317, %s316, 3
          %s319 = smul.addr %s318, 2
          %s320 = scalar_lea.vmem %s5, %s319
          %s321 = sld [smem:[#allocation3 + %s39]]
        $region32: #{moe_forward.1} parent=19 // pred_fallthru
          _
        // Predicated region
        $region33: #{moe_forward.1} parent=19 // pred_check
          %p322 = pneg %p177
        $region34: #{moe_forward.1} parent=19 // pred_check_branch
          %324 = sbr.rel (%p322) target = $region36
        $region35: #{moe_forward.1} parent=19 // pred_region
          %s325 = sand.u32 %s167, 1
          %s326 = scalar_lea.sflag [#allocation6], %s325
          %s327 = sand.u32 %s167, 1
          %s328 = smul.addr %s327, 64
          %s329 = scalar_lea.vmem [#allocation5], %s328
          %s330 = sld [smem:[#allocation3 + %s39]]
          %332 = vsyncadd %s326, 0
          %s333 = smul.addr %s330, 16
          %s334 = smul.addr %s333, 4
          %s335 = scalar_lea.hbm %s6, %s334
          %s336 = sshll.u32 %s335, 4
          %s337 = int_to_ptr.hbm [resolvable:$true] %s336
          %s338 = sshll.u32 %s329, 4
          %s339 = int_to_ptr.vmem [resolvable:$true] %s338
          %344 = dma.hbm_to_vmem [thread:$0]  %s337, 1024, %s339, %s326, 64, 64, 4
        $region36: #{moe_forward.1} parent=19 // pred_fallthru
          _
        // Predicated region
        $region37: #{moe_forward.1} parent=19 // pred_check
          %p345 = pneg %p205
        $region38: #{moe_forward.1} parent=19 // pred_check_branch
          %347 = sbr.rel (%p345) target = $region40
        $region39: #{moe_forward.1} parent=19 // pred_region
          %s348 = sand.u32 %s195, 1
          %s349 = scalar_lea.sflag [#allocation9], %s348
          %s350 = sand.u32 %s195, 1
          %s351 = smul.addr %s350, 64
          %s352 = scalar_lea.vmem [#allocation8], %s351
          %s353 = sld [smem:[#allocation3 + %s39]]
          %355 = vsyncadd %s349, 0
          %s356 = smul.addr %s353, 16
          %s357 = smul.addr %s356, 4
          %s358 = scalar_lea.hbm %s7, %s357
          %s359 = sshll.u32 %s358, 4
          %s360 = int_to_ptr.hbm [resolvable:$true] %s359
          %s361 = sshll.u32 %s352, 4
          %s362 = int_to_ptr.vmem [resolvable:$true] %s361
          %367 = dma.hbm_to_vmem [thread:$0]  %s360, 1024, %s362, %s349, 64, 64, 4
        $region40: #{moe_forward.1} parent=19 // pred_fallthru
          _
        // Predicated region
        $region41: #{moe_forward.1} parent=19 // pred_check
          %p368 = pneg %p233
        $region42: #{moe_forward.1} parent=19 // pred_check_branch
          %370 = sbr.rel (%p368) target = $region44
        $region43: #{moe_forward.1} parent=19 // pred_region
          %s371 = sld [smem:[#allocation3 + %s39]]
          %p372 = scmp.lt.s32.totalorder %s371, 3
          %s373 = scalar_select %p372, %s371, 3
          %s374 = scalar_lea.vmem %s8, %s373
          %s375 = sld [smem:[#allocation3 + %s39]]
        $region44: #{moe_forward.1} parent=19 // pred_fallthru
          _
      $region20: #{moe_forward.1} parent=5 // pred_fallthru
        _
      %p376 = scmp.le.s32.totalorder 1, %s31
      %p377 = scmp.lt.s32.totalorder %s31, 5
      %p378 = pnand %p376, %p377
      %p379 = pneg %p378
      // Predicated region
      $region45: #{moe_forward.1} parent=5 // pred_check
        _
      $region46: #{moe_forward.1} parent=5 // pred_check_branch
        %381 = sbr.rel (%p378) target = $region48
      $region47: #{moe_forward.1} parent=5 // pred_region
        %s382 = ssub.s32 %s31, 1
        %s383 = sand.u32 %s170, 1
        %s384 = scalar_lea.sflag [#allocation6], %s383
        %s385 = sand.u32 %s170, 1
        %s386 = smul.addr %s385, 64
        %s387 = scalar_lea.vmem [#allocation5], %s386
        // Predicated region
        $region49: #{moe_forward.1} parent=47 // pred_check
          %p388 = pneg %p183
        $region50: #{moe_forward.1} parent=47 // pred_check_branch
          %390 = sbr.rel (%p388) target = $region52
        $region51: #{moe_forward.1} parent=47 // pred_region
          %392 = dma.done %s384, 1024
        $region52: #{moe_forward.1} parent=47 // pred_fallthru
          _
        %s393 = sand.u32 %s198, 1
        %s394 = scalar_lea.sflag [#allocation9], %s393
        %s395 = sand.u32 %s198, 1
        %s396 = smul.addr %s395, 64
        %s397 = scalar_lea.vmem [#allocation8], %s396
        // Predicated region
        $region53: #{moe_forward.1} parent=47 // pred_check
          %p398 = pneg %p211
        $region54: #{moe_forward.1} parent=47 // pred_check_branch
          %400 = sbr.rel (%p398) target = $region56
        $region55: #{moe_forward.1} parent=47 // pred_region
          %402 = dma.done %s394, 1024
        $region56: #{moe_forward.1} parent=47 // pred_fallthru
          _
        %p403 = scmp.lt.s32.totalorder %s40, 0
        %s404 = scalar_select %p403, %s40, 0
        %s405 = smul.addr %s404, 4
        %s406 = scalar_lea.vmem %s2, %s405
        %p407 = pneg %p69
        %p408 = pneg %p66
        %s409 = sld [smem:[#allocation3 + %s41]]
        %p410 = scmp.lt.s32.totalorder %s409, 3
        %s411 = scalar_select %p410, %s409, 3
        %p412 = scmp.lt.s32.totalorder %s40, 0
        %s413 = scalar_select %p412, %s40, 0
        %s414 = sadd.s32 %s413, %s411
        %s415 = smul.addr %s414, 8
        %s416 = scalar_lea.vmem %s3, %s415
        %p417 = pneg %p99
        %p418 = pneg %p96
        %s419 = sld [smem:[#allocation3 + %s41]]
        %p420 = scmp.lt.s32.totalorder %s419, 3
        %s421 = scalar_select %p420, %s419, 3
        %s422 = smul.addr %s421, 4
        %s423 = smul.addr %s422, 4
        %s424 = scalar_lea.vmem %s4, %s423
        %p425 = pneg %p127
        %p426 = pneg %p124
        %s427 = sld [smem:[#allocation3 + %s41]]
        %p428 = scmp.lt.s32.totalorder %s427, 3
        %s429 = scalar_select %p428, %s427, 3
        %s430 = smul.addr %s429, 2
        %s431 = scalar_lea.vmem %s5, %s430
        %p432 = pneg %p155
        %p433 = pneg %p152
        %s434 = sand.u32 %s170, 1
        %s435 = scalar_lea.sflag [#allocation6], %s434
        %s436 = sand.u32 %s170, 1
        %s437 = smul.addr %s436, 64
        %s438 = scalar_lea.vmem [#allocation5], %s437
        %p439 = pneg %p183
        %p440 = pneg %p180
        %s441 = sand.u32 %s198, 1
        %s442 = scalar_lea.sflag [#allocation9], %s441
        %s443 = sand.u32 %s198, 1
        %s444 = smul.addr %s443, 64
        %s445 = scalar_lea.vmem [#allocation8], %s444
        %p446 = pneg %p211
        %p447 = pneg %p208
        %s448 = sld [smem:[#allocation3 + %s41]]
        %p449 = scmp.lt.s32.totalorder %s448, 3
        %s450 = scalar_select %p449, %s448, 3
        %s451 = scalar_lea.vmem %s8, %s450
        %p452 = pneg %p239
        %p453 = pneg %p236
        %p454 = pneg %p265
        %p455 = pneg %p262
        %p456 = scmp.lt.s32.totalorder %s40, 0
        %s457 = scalar_select %p456, %s40, 0
        %s458 = smul.addr %s457, 4
        %s459 = scalar_lea.vmem %s2, %s458
        %s460 = sld [smem:[#allocation3 + %s41]]
        %p461 = scmp.lt.s32.totalorder %s460, 3
        %s462 = scalar_select %p461, %s460, 3
        %p463 = scmp.lt.s32.totalorder %s40, 0
        %s464 = scalar_select %p463, %s40, 0
        %s465 = sadd.s32 %s464, %s462
        %s466 = smul.addr %s465, 8
        %s467 = scalar_lea.vmem %s3, %s466
        %s468 = sld [smem:[#allocation3 + %s41]]
        %s469 = sld [smem:[#allocation3 + %s41]]
        %p470 = scmp.lt.s32.totalorder %s469, 3
        %s471 = scalar_select %p470, %s469, 3
        %s472 = smul.addr %s471, 4
        %s473 = smul.addr %s472, 4
        %s474 = scalar_lea.vmem %s4, %s473
        %s475 = sld [smem:[#allocation3 + %s41]]
        %s476 = sld [smem:[#allocation3 + %s41]]
        %p477 = scmp.lt.s32.totalorder %s476, 3
        %s478 = scalar_select %p477, %s476, 3
        %s479 = smul.addr %s478, 2
        %s480 = scalar_lea.vmem %s5, %s479
        %s481 = sld [smem:[#allocation3 + %s41]]
        %s482 = sld [smem:[#allocation3 + %s41]]
        %s483 = sld [smem:[#allocation3 + %s41]]
        %s484 = sld [smem:[#allocation3 + %s41]]
        %p485 = scmp.lt.s32.totalorder %s484, 3
        %s486 = scalar_select %p485, %s484, 3
        %s487 = scalar_lea.vmem %s8, %s486
        %s488 = sld [smem:[#allocation3 + %s41]]
        %p490 = scmp.eq.s32.totalorder %s41, 0
        // Predicated region
        $region57: #{moe_forward.1} parent=47 // pred_check
          %p491 = pneg %p490
        $region58: #{moe_forward.1} parent=47 // pred_check_branch
          %493 = sbr.rel (%p491) target = $region60
        $region59: #{moe_forward.1} parent=47 // pred_region
          %494 = vst [vmem:[#allocation10] sm:$0xff] 0.0
        $region60: #{moe_forward.1} parent=47 // pred_fallthru
          _
        %s495 = sld [smem:[#allocation4]]
        %p496 = scmp.lt.s32.totalorder %s41, %s495
        // Predicated region
        $region61: #{moe_forward.1} parent=47 // pred_check
          %p497 = pneg %p496
        $region62: #{moe_forward.1} parent=47 // pred_check_branch
          %499 = sbr.rel (%p497) target = $region64
        $region63: #{moe_forward.1} parent=47 // pred_region
          %v500 = vld [vmem:[%s459] sm:$0xf]
          %v501 = vld [vmem:[%s480] sm:$0x3]
          %v502 = vld [vmem:[%s474] sm:$0xf]
          %v503 = vld [vmem:[%s474 + $0x4] sm:$0xf]
          %v504 = vld [vmem:[%s474 + $0x8] sm:$0xf]
          %v505 = vld [vmem:[%s474 + $0xc] sm:$0xf]
          %v506 = vperm.slane %v501, 0
          %v511 = vunpack.c.l.b16 %v502
          %v512 = vunpack.c.l.b16 %v503
          %v513 = vunpack.c.l.b16 %v504
          %v514 = vunpack.c.l.b16 %v505
          %v515 = vpack.c.b16 %v512, %v511
          %v516 = vpack.c.b16 %v514, %v513
          %vm519 = vcmask 261120
          %v521 = vsel %vm519, %v500, 0
          %523 = vmatpush.bf16.msra.mxu0 0
          %524 = vmatpush.bf16.msra.mxu0 0
          %525 = vmatpush.bf16.msra.mxu0 0
          %526 = vmatpush.bf16.msra.mxu0 0
          %527 = vmatpush.bf16.msra.mxu0 0
          %528 = vmatpush.bf16.msra.mxu0 0
          %529 = vmatpush.bf16.msra.mxu0 %v516
          %530 = vmatpush.bf16.msra.mxu0 %v515
          %531 = vmatmul.bf16.gmra.mxu0 %v521
          %v532 = vpop.f32.mrf.mxu0
          %v533 = vadd.f32 %v506, %v532
          %v534 = vpop.f32.mrf.mxu0
          %535 = vdwg.mxu0
          %v536 = vmax.f32 %v533, 0.0
          %v537 = vpack.c.bf16 %v536, %v536
          %v538 = vld [vmem:[%s387] sm:$0xf]
          %v539 = vld [vmem:[%s387 + $0x4] sm:$0xf]
          %v540 = vld [vmem:[%s387 + $0x8] sm:$0xf]
          %v541 = vld [vmem:[%s387 + $0xc] sm:$0xf]
          %v542 = vld [vmem:[%s387 + $0x10] sm:$0xf]
          %v543 = vld [vmem:[%s387 + $0x14] sm:$0xf]
          %v544 = vld [vmem:[%s387 + $0x18] sm:$0xf]
          %v545 = vld [vmem:[%s387 + $0x1c] sm:$0xf]
          %v546 = vld [vmem:[%s387 + $0x20] sm:$0xf]
          %v547 = vld [vmem:[%s387 + $0x24] sm:$0xf]
          %v548 = vld [vmem:[%s387 + $0x28] sm:$0xf]
          %v549 = vld [vmem:[%s387 + $0x2c] sm:$0xf]
          %v550 = vld [vmem:[%s387 + $0x30] sm:$0xf]
          %v551 = vld [vmem:[%s387 + $0x34] sm:$0xf]
          %v552 = vld [vmem:[%s387 + $0x38] sm:$0xf]
          %v553 = vld [vmem:[%s387 + $0x3c] sm:$0xf]
          %v554 = vperm.slane %v501, 1
          %v571 = vunpack.c.l.b16 %v538
          %v572 = vunpack.c.l.b16 %v539
          %v573 = vunpack.c.l.b16 %v540
          %v574 = vunpack.c.l.b16 %v541
          %v575 = vunpack.c.l.b16 %v542
          %v576 = vunpack.c.l.b16 %v543
          %v577 = vunpack.c.l.b16 %v544
          %v578 = vunpack.c.l.b16 %v545
          %v579 = vunpack.c.l.b16 %v546
          %v580 = vunpack.c.l.b16 %v547
          %v581 = vunpack.c.l.b16 %v548
          %v582 = vunpack.c.l.b16 %v549
          %v583 = vunpack.c.l.b16 %v550
          %v584 = vunpack.c.l.b16 %v551
          %v585 = vunpack.c.l.b16 %v552
          %v586 = vunpack.c.l.b16 %v553
          %v587 = vpack.c.b16 %v572, %v571
          %v588 = vpack.c.b16 %v574, %v573
          %v589 = vpack.c.b16 %v576, %v575
          %v590 = vpack.c.b16 %v578, %v577
          %v591 = vpack.c.b16 %v580, %v579
          %v592 = vpack.c.b16 %v582, %v581
          %v593 = vpack.c.b16 %v584, %v583
          %v594 = vpack.c.b16 %v586, %v585
          %603 = vmatpush.bf16.msra.mxu0 %v594
          %604 = vmatpush.bf16.msra.mxu0 %v593
          %605 = vmatpush.bf16.msra.mxu0 %v592
          %606 = vmatpush.bf16.msra.mxu0 %v591
          %607 = vmatpush.bf16.msra.mxu0 %v590
          %608 = vmatpush.bf16.msra.mxu0 %v589
          %609 = vmatpush.bf16.msra.mxu0 %v588
          %610 = vmatpush.bf16.msra.mxu0 %v587
          %611 = vmatmul.bf16.gmra.mxu0 %v537
          %v612 = vpop.f32.mrf.mxu0
          %v613 = vadd.f32 %v554, %v612
          %v614 = vpop.f32.mrf.mxu0
          %615 = vdwg.mxu0
          %v616 = vmax.f32 %v613, 0.0
          %v617 = vpack.c.bf16 %v616, %v616
          %v618 = vld [vmem:[%s397] sm:$0xf]
          %v619 = vld [vmem:[%s397 + $0x4] sm:$0xf]
          %v620 = vld [vmem:[%s397 + $0x8] sm:$0xf]
          %v621 = vld [vmem:[%s397 + $0xc] sm:$0xf]
          %v622 = vld [vmem:[%s397 + $0x10] sm:$0xf]
          %v623 = vld [vmem:[%s397 + $0x14] sm:$0xf]
          %v624 = vld [vmem:[%s397 + $0x18] sm:$0xf]
          %v625 = vld [vmem:[%s397 + $0x1c] sm:$0xf]
          %v626 = vld [vmem:[%s397 + $0x20] sm:$0xf]
          %v627 = vld [vmem:[%s397 + $0x24] sm:$0xf]
          %v628 = vld [vmem:[%s397 + $0x28] sm:$0xf]
          %v629 = vld [vmem:[%s397 + $0x2c] sm:$0xf]
          %v630 = vld [vmem:[%s397 + $0x30] sm:$0xf]
          %v631 = vld [vmem:[%s397 + $0x34] sm:$0xf]
          %v632 = vld [vmem:[%s397 + $0x38] sm:$0xf]
          %v633 = vld [vmem:[%s397 + $0x3c] sm:$0xf]
          %v634 = vld [vmem:[%s487] sm:$0x1]
          %v636 = vperm.slane %v634, 0
          %v654 = vunpack.c.l.b16 %v618
          %v655 = vunpack.c.l.b16 %v619
          %v656 = vunpack.c.l.b16 %v620
          %v657 = vunpack.c.l.b16 %v621
          %v658 = vunpack.c.l.b16 %v622
          %v659 = vunpack.c.l.b16 %v623
          %v660 = vunpack.c.l.b16 %v624
          %v661 = vunpack.c.l.b16 %v625
          %v662 = vunpack.c.l.b16 %v626
          %v663 = vunpack.c.l.b16 %v627
          %v664 = vunpack.c.l.b16 %v628
          %v665 = vunpack.c.l.b16 %v629
          %v666 = vunpack.c.l.b16 %v630
          %v667 = vunpack.c.l.b16 %v631
          %v668 = vunpack.c.l.b16 %v632
          %v669 = vunpack.c.l.b16 %v633
          %v670 = vpack.c.b16 %v655, %v654
          %v671 = vpack.c.b16 %v657, %v656
          %v672 = vpack.c.b16 %v659, %v658
          %v673 = vpack.c.b16 %v661, %v660
          %v674 = vpack.c.b16 %v663, %v662
          %v675 = vpack.c.b16 %v665, %v664
          %v676 = vpack.c.b16 %v667, %v666
          %v677 = vpack.c.b16 %v669, %v668
          %686 = vmatpush.bf16.msra.mxu0 %v677
          %687 = vmatpush.bf16.msra.mxu0 %v676
          %688 = vmatpush.bf16.msra.mxu0 %v675
          %689 = vmatpush.bf16.msra.mxu0 %v674
          %690 = vmatpush.bf16.msra.mxu0 %v673
          %691 = vmatpush.bf16.msra.mxu0 %v672
          %692 = vmatpush.bf16.msra.mxu0 %v671
          %693 = vmatpush.bf16.msra.mxu0 %v670
          %694 = vmatmul.bf16.gmra.mxu0 %v617
          %v695 = vpop.f32.mrf.mxu0
          %v696 = vadd.f32 %v636, %v695
          %v697 = vpop.f32.mrf.mxu0
          %698 = vdwg.mxu0
          %v699 = vld [vmem:[#allocation10] sm:$0xff]
          %v700 = vld [vmem:[%s467] sm:$0xff]
          %702 = vset.pattern.permute.xlu0 0
          %703 = vperm.xlu0 %702, %v700
          %v704 = vpop.permute.xlu0 %703
          %v706 = vmul.f32 %v704, %v696
          %v707 = vadd.f32 %v699, %v706
          %708 = vst [vmem:[#allocation10] sm:$0xff] %v707
        $region64: #{moe_forward.1} parent=47 // pred_fallthru
          _
        // Predicated region
        $region65: #{moe_forward.1} parent=47 // pred_check
          %p709 = pneg %p262
        $region66: #{moe_forward.1} parent=47 // pred_check_branch
          %711 = sbr.rel (%p709) target = $region68
        $region67: #{moe_forward.1} parent=47 // pred_region
          %713 = vsyncadd [#allocation7], 0
          %s714 = smul.addr %s40, 8
          %s715 = scalar_lea.hbm %s9, %s714
          %s717 = sshll.u32 [#allocation10], 4
          %s718 = int_to_ptr.vmem [resolvable:$true] %s717
          %s719 = sshll.u32 %s715, 4
          %s720 = int_to_ptr.hbm [resolvable:$true] %s719
          %722 = dma.vmem_to_hbm [thread:$0]  %s718, 128, %s720, [#allocation7]
        $region68: #{moe_forward.1} parent=47 // pred_fallthru
          _
        // Predicated region
        $region69: #{moe_forward.1} parent=47 // pred_check
          %p723 = pneg %p262
        $region70: #{moe_forward.1} parent=47 // pred_check_branch
          %725 = sbr.rel (%p723) target = $region72
        $region71: #{moe_forward.1} parent=47 // pred_region
          %727 = dma.done [#allocation7], 128
        $region72: #{moe_forward.1} parent=47 // pred_fallthru
          _
      $region48: #{moe_forward.1} parent=5 // pred_fallthru
        _
      %p728 = scmp.le.s32.totalorder 2, %s31
      // Predicated region
      $region73: #{moe_forward.1} parent=5 // pred_check
        %p729 = pneg %p728
      $region74: #{moe_forward.1} parent=5 // pred_check_branch
        %731 = sbr.rel (%p729) target = $region76
      $region75: #{moe_forward.1} parent=5 // pred_region
        %s732 = ssub.s32 %s31, 2
      $region76: #{moe_forward.1} parent=5 // pred_fallthru
        _
    $region6: #{moe_forward.1} parent=1 // loop_footer
      %s35 = sadd.s32 1, %s31
    $region7: #{moe_forward.1} parent=1 // loop_footer_branch
      %30 = sbr.rel target = $region3
    $region8: #{moe_forward.1} parent=1 // loop_exit
      _
    %733 = vsyncpa [#allocation6], 1
    %s734 = scalar_lea.sflag [#allocation6], 1
    %735 = vsyncpa %s734, 1
    %736 = vsyncpa [#allocation9], 1
    %s737 = scalar_lea.sflag [#allocation9], 1
    %738 = vsyncpa %s737, 1
    %739 = vsyncpa [#allocation7], 1
    %s740 = scalar_lea.sflag [#allocation7], 1
    %741 = vsyncpa %s740, 1

</llo_original>
